<compile_context>
chip_gen: v6e
topology: v6e:2x2x1
jax: 0.10.0
libtpu: 0.0.40
codegen_flags: <defaults>
</compile_context>

<pallas_src>
import functools

import jax
import jax.numpy as jnp
from jax import lax
from jax.experimental import pallas as pl
from jax.experimental.pallas import tpu as pltpu


def _inverted_residual_kernel(x_ref, w1_ref, b1_ref, wd0_ref, wd1_ref, wd2_ref,
                              bd_ref, w2_ref, b2_ref, o_ref, *,
                              use_res_connect, compute_dtype):
    nb, _, L = x_ref.shape

    # Block-invariant params, loaded once per grid step (hoisted out of the loop).
    w1 = w1_ref[...]        # (hidden, inp)  bf16
    w2 = w2_ref[...]        # (oup, hidden)  bf16
    b1 = b1_ref[...]        # (hidden, 1)    f32
    b2 = b2_ref[...]        # (oup, 1)       f32
    wd0 = wd0_ref[...]      # (hidden, 1)    compute_dtype
    wd1 = wd1_ref[...]
    wd2 = wd2_ref[...]
    bd = bd_ref[...]

    # k=3, pad=1 depthwise edge masks, generated in-kernel.
    lane = lax.broadcasted_iota(jnp.int32, (1, L), 1)
    not_first = lane > 0
    not_last = lane < (L - 1)

    @pl.loop(0, nb)
    def _(n):
        x = x_ref[n]                                           # (inp, L) f32

        # ---- pointwise expand (1x1 conv) + folded BN + ReLU6, f32 accumulation ----
        h32 = jnp.dot(w1, x.astype(jnp.bfloat16),
                      preferred_element_type=jnp.float32)      # (hidden, L) f32
        h32 = jnp.clip(h32 + b1, 0.0, 6.0)

        # ---- depthwise conv k=3, stride=1, pad=1 + folded BN + ReLU6 ----
        # XLU rolls on the f32 tile (guaranteed lowering); masked edges; the
        # 3-tap FMA chain runs in compute_dtype (bf16 on v6e/v7x, f32 on v5e).
        h = h32.astype(compute_dtype)
        h_l = jnp.where(not_first, pltpu.roll(h32, shift=1, axis=1),
                        0.0).astype(compute_dtype)             # h[c, l-1]
        h_r = jnp.where(not_last, pltpu.roll(h32, shift=L - 1, axis=1),
                        0.0).astype(compute_dtype)             # h[c, l+1]
        d = wd0 * h_l + wd1 * h + wd2 * h_r + bd
        d = jnp.clip(d, 0.0, 6.0)

        # ---- pointwise project (1x1 conv) + folded BN, f32 accumulation ----
        y = jnp.dot(w2, d.astype(jnp.bfloat16),
                    preferred_element_type=jnp.float32)        # (oup, L) f32
        y = y + b2
        if use_res_connect:
            y = y + x                                          # exact f32 residual
        o_ref[n] = y.astype(o_ref.dtype)


def _resident_spec(arr):
    return pl.BlockSpec(arr.shape, lambda g: (0,) * arr.ndim)


def _default_compute_dtype():
    """bf16 elementwise on chips with a bf16 VPU (v6e / v7x); f32 otherwise."""
    try:
        kind = jax.devices()[0].device_kind.lower()
    except Exception:
        return jnp.float32
    if any(v in kind for v in ("v2", "v3", "v4", "v5")):
        return jnp.float32
    return jnp.bfloat16


def _pick_samples_per_step(N, L, *, target_lanes=16384, min_steps=4):
    """Largest divisor of N keeping the per-step lane slab <= target_lanes while
    leaving at least `min_steps` grid steps for pipelining / megacore sharding."""
    best = 1
    for nb in range(1, N + 1):
        if N % nb:
            continue
        if nb * L > target_lanes:
            break
        if N // nb >= min_steps:
            best = nb
    return best


def inverted_residual(x, w1, b1, wd, bd, w2, b2, *, use_res_connect=True,
                      samples_per_step=None, compute_dtype=None):
    """x: (N, inp, L) f32.  w1: (hidden, inp), wd: (hidden, 3), w2: (oup, hidden).
    b1/bd/b2: (C, 1) folded-BN biases.  Returns (N, oup, L) in x.dtype."""
    N, inp, L = x.shape
    hidden = w1.shape[0]
    oup = w2.shape[0]
    if use_res_connect and inp != oup:
        raise ValueError("use_res_connect=True requires inp == oup")

    if compute_dtype is None:
        compute_dtype = _default_compute_dtype()
    if samples_per_step is None:
        samples_per_step = _pick_samples_per_step(N, L)
    nb = samples_per_step
    assert N % nb == 0, "samples_per_step must divide the batch"
    G = N // nb

    # MXU operands in bf16 (f32 accumulation in-kernel).  x itself stays f32:
    # the bf16 cast happens in-kernel (no extra HBM pass) and the residual adds
    # the original f32 values.
    w1_mm = w1.astype(jnp.bfloat16)
    w2_mm = w2.astype(jnp.bfloat16)
    b1_c = b1.astype(jnp.float32)
    b2_c = b2.astype(jnp.float32)
    wd0 = wd[:, 0:1].astype(compute_dtype)
    wd1 = wd[:, 1:2].astype(compute_dtype)
    wd2 = wd[:, 2:3].astype(compute_dtype)
    bd_c = bd.astype(compute_dtype)

    # Explicit VMEM limit from the real per-step footprint (double-buffered I/O
    # blocks + resident params + in-loop intermediates) with headroom; the
    # scoped default is only 16-32 MiB.
    ew = jnp.dtype(compute_dtype).itemsize
    blk_bytes = 2 * (nb * inp * L * 4) + 2 * (nb * oup * L * x.dtype.itemsize)
    tmp_bytes = hidden * L * (3 * 4 + 5 * ew) + oup * L * 4
    par_bytes = 2 * ((hidden * inp + oup * hidden) * 2 +
                     (hidden + oup) * 4 + 4 * hidden * ew)
    vmem_limit = min(max(2 * (blk_bytes + tmp_bytes + par_bytes) + (8 << 20),
                         32 << 20), 100 << 20)

    kernel = functools.partial(_inverted_residual_kernel,
                               use_res_connect=use_res_connect,
                               compute_dtype=compute_dtype)

    return pl.pallas_call(
        kernel,
        out_shape=jax.ShapeDtypeStruct((N, oup, L), x.dtype),
        grid_spec=pltpu.PrefetchScalarGridSpec(
            num_scalar_prefetch=0,
            grid=(G,),
            in_specs=[
                pl.BlockSpec((nb, inp, L), lambda g: (g, 0, 0)),
                _resident_spec(w1_mm), _resident_spec(b1_c),
                _resident_spec(wd0), _resident_spec(wd1), _resident_spec(wd2),
                _resident_spec(bd_c),
                _resident_spec(w2_mm), _resident_spec(b2_c),
            ],
            out_specs=pl.BlockSpec((nb, oup, L), lambda g: (g, 0, 0)),
        ),
        compiler_params=pltpu.CompilerParams(
            dimension_semantics=("parallel",),
            vmem_limit_bytes=vmem_limit),
    )(x, w1_mm, b1_c, wd0, wd1, wd2, bd_c, w2_mm, b2_c)


def _fold_bn(w, gamma, beta, mean, var, eps=1e-5):
    """Fold eval-mode BatchNorm1d into a bias-free conv weight (out_ch leading)."""
    scale = gamma / jnp.sqrt(var + eps)
    return w * scale[:, None], (beta - mean * scale)[:, None]


def _reference(x, w1, b1, wd, bd, w2, b2, *, use_res_connect,
               mm_dtype=jnp.float32, ew_dtype=jnp.float32):
    """Pure-JAX reference.  mm_dtype/ew_dtype mirror the kernel precision policy."""
    mm = lambda a: a.astype(mm_dtype)
    ew = lambda a: a.astype(ew_dtype)
    h = jnp.einsum("hc,ncl->nhl", mm(w1), mm(x),
                   preferred_element_type=jnp.float32) + b1[None]
    h = jnp.clip(h, 0.0, 6.0)
    hp = jnp.pad(h, ((0, 0), (0, 0), (1, 1)))
    d = (ew(wd[None, :, 0:1]) * ew(hp[:, :, :-2])
         + ew(wd[None, :, 1:2]) * ew(hp[:, :, 1:-1])
         + ew(wd[None, :, 2:3]) * ew(hp[:, :, 2:])
         + ew(bd[None]))
    d = jnp.clip(d, 0.0, 6.0)
    y = jnp.einsum("oh,nhl->nol", mm(w2), mm(d),
                   preferred_element_type=jnp.float32) + b2[None]
    if use_res_connect:
        y = y + x
    return y


if __name__ == "__main__":
    key = jax.random.PRNGKey(0)
    ks = jax.random.split(key, 16)

    # InvertedResidual(inp=8, oup=8, stride=1, expand_ratio=4) -> hidden_dim = 32
    N, L = 8, 128
    inp, expand_ratio = 8, 4
    hidden = round(inp * expand_ratio)

    x = jax.random.normal(ks[0], (N, inp, L), dtype=jnp.float32)

    def bn_params(k, c):
        k1, k2, k3, k4 = jax.random.split(k, 4)
        gamma = 1.0 + 0.1 * jax.random.normal(k1, (c,), jnp.float32)
        beta = 0.1 * jax.random.normal(k2, (c,), jnp.float32)
        mean = 0.1 * jax.random.normal(k3, (c,), jnp.float32)
        var = 1.0 + 0.1 * jnp.abs(jax.random.normal(k4, (c,), jnp.float32))
        return gamma, beta, mean, var

    def make_params(koff, oup_c):
        w_pw1 = jax.random.normal(ks[koff + 0], (hidden, inp), jnp.float32) * 0.2
        w_dw = jax.random.normal(ks[koff + 1], (hidden, 3), jnp.float32) * 0.2
        w_pw2 = jax.random.normal(ks[koff + 2], (oup_c, hidden), jnp.float32) * 0.2
        w1, b1 = _fold_bn(w_pw1, *bn_params(ks[koff + 3], hidden))
        wd, bd = _fold_bn(w_dw, *bn_params(ks[koff + 4], hidden))
        w2, b2 = _fold_bn(w_pw2, *bn_params(ks[koff + 5], oup_c))
        return w1, b1, wd, bd, w2, b2

    compute_dtype = _default_compute_dtype()

    def check(params, oup_c, use_res, **kw):
        out = jax.block_until_ready(
            inverted_residual(x, *params, use_res_connect=use_res, **kw))
        assert out.shape == (N, oup_c, L)
        # Check against a reference that mirrors the kernel's precision policy.
        ref_pol = _reference(x, *params, use_res_connect=use_res,
                             mm_dtype=jnp.bfloat16, ew_dtype=compute_dtype)
        assert jnp.allclose(out, ref_pol, atol=5e-2, rtol=5e-2), \
            "mismatch vs precision-matched reference"
        # Loose sanity check against the full-f32 PyTorch-semantics reference.
        ref_f32 = _reference(x, *params, use_res_connect=use_res)
        assert jnp.allclose(out, ref_f32, atol=2e-1, rtol=2e-1), \
            "mismatch vs f32 reference"

    # Case 1: inp == oup -> residual path; auto batch grouping (nb=2, G=4 steps).
    check(make_params(1, inp), inp, use_res=True)

    # Case 2: inp != oup -> no residual; single-sample blocks (nb=1, G=8 steps).
    oup2 = 16
    check(make_params(8, oup2), oup2, use_res=False, samples_per_step=1)

    print("KERNEL_OK")
</pallas_src>

<mosaic_0001>
module attributes {stable_mosaic.version = 11 : i64} {
  func.func @_inverted_residual_kernel(%arg0: i32, %arg1: memref<2x8x128xf32, #tpu.memory_space<vmem>>, %arg2: memref<32x8xbf16, #tpu.memory_space<vmem>>, %arg3: memref<32x1xf32, #tpu.memory_space<vmem>>, %arg4: memref<32x1xbf16, #tpu.memory_space<vmem>>, %arg5: memref<32x1xbf16, #tpu.memory_space<vmem>>, %arg6: memref<32x1xbf16, #tpu.memory_space<vmem>>, %arg7: memref<32x1xbf16, #tpu.memory_space<vmem>>, %arg8: memref<8x32xbf16, #tpu.memory_space<vmem>>, %arg9: memref<8x1xf32, #tpu.memory_space<vmem>>, %arg10: memref<2x8x128xf32, #tpu.memory_space<vmem>>) attributes {dimension_semantics = [#tpu.dimension_semantics<parallel>], iteration_bounds = array<i64: 4>, scalar_prefetch = 0 : i64, scratch_operands = 0 : i64, tpu.core_type = #tpu.core_type<tc>, window_params = [{transform_indices = @transform_0, window_bounds = array<i64: 2, 8, 128>}, {pipeline_mode = #tpu.pipeline_mode<synchronous>, transform_indices = @transform_1, window_bounds = array<i64: 32, 8>}, {pipeline_mode = #tpu.pipeline_mode<synchronous>, transform_indices = @transform_2, window_bounds = array<i64: 32, 1>}, {pipeline_mode = #tpu.pipeline_mode<synchronous>, transform_indices = @transform_3, window_bounds = array<i64: 32, 1>}, {pipeline_mode = #tpu.pipeline_mode<synchronous>, transform_indices = @transform_4, window_bounds = array<i64: 32, 1>}, {pipeline_mode = #tpu.pipeline_mode<synchronous>, transform_indices = @transform_5, window_bounds = array<i64: 32, 1>}, {pipeline_mode = #tpu.pipeline_mode<synchronous>, transform_indices = @transform_6, window_bounds = array<i64: 32, 1>}, {pipeline_mode = #tpu.pipeline_mode<synchronous>, transform_indices = @transform_7, window_bounds = array<i64: 8, 32>}, {pipeline_mode = #tpu.pipeline_mode<synchronous>, transform_indices = @transform_8, window_bounds = array<i64: 8, 1>}, {transform_indices = @transform_9, window_bounds = array<i64: 2, 8, 128>}]} {
    %c0 = arith.constant 0 : index
    %c0_0 = arith.constant 0 : index
    %0 = vector.load %arg2[%c0, %c0_0] : memref<32x8xbf16, #tpu.memory_space<vmem>>, vector<32x8xbf16>
    %c0_1 = arith.constant 0 : index
    %c0_2 = arith.constant 0 : index
    %1 = vector.load %arg8[%c0_1, %c0_2] : memref<8x32xbf16, #tpu.memory_space<vmem>>, vector<8x32xbf16>
    %c0_3 = arith.constant 0 : index
    %c0_4 = arith.constant 0 : index
    %2 = vector.load %arg3[%c0_3, %c0_4] : memref<32x1xf32, #tpu.memory_space<vmem>>, vector<32x1xf32>
    %c0_5 = arith.constant 0 : index
    %c0_6 = arith.constant 0 : index
    %3 = vector.load %arg9[%c0_5, %c0_6] : memref<8x1xf32, #tpu.memory_space<vmem>>, vector<8x1xf32>
    %c0_7 = arith.constant 0 : index
    %c0_8 = arith.constant 0 : index
    %4 = vector.load %arg4[%c0_7, %c0_8] : memref<32x1xbf16, #tpu.memory_space<vmem>>, vector<32x1xbf16>
    %c0_9 = arith.constant 0 : index
    %c0_10 = arith.constant 0 : index
    %5 = vector.load %arg5[%c0_9, %c0_10] : memref<32x1xbf16, #tpu.memory_space<vmem>>, vector<32x1xbf16>
    %c0_11 = arith.constant 0 : index
    %c0_12 = arith.constant 0 : index
    %6 = vector.load %arg6[%c0_11, %c0_12] : memref<32x1xbf16, #tpu.memory_space<vmem>>, vector<32x1xbf16>
    %c0_13 = arith.constant 0 : index
    %c0_14 = arith.constant 0 : index
    %7 = vector.load %arg7[%c0_13, %c0_14] : memref<32x1xbf16, #tpu.memory_space<vmem>>, vector<32x1xbf16>
    %8 = tpu.iota {dimensions = array<i32: 1>} : vector<1x128xi32>
    %c0_i32 = arith.constant 0 : i32
    %9 = vector.broadcast %c0_i32 : i32 to vector<1x128xi32>
    %10 = arith.cmpi sgt, %8, %9 : vector<1x128xi32>
    %c127_i32 = arith.constant 127 : i32
    %11 = vector.broadcast %c127_i32 : i32 to vector<1x128xi32>
    %12 = arith.cmpi slt, %8, %11 : vector<1x128xi32>
    %c0_i32_15 = arith.constant 0 : i32
    %c2_i32 = arith.constant 2 : i32
    %13 = arith.addi %c0_i32_15, %c2_i32 : i32
    %c1_i32 = arith.constant 1 : i32
    scf.for %arg11 = %c0_i32_15 to %13 step %c1_i32  : i32 {
      %c1_i32_17 = arith.constant 1 : i32
      %14 = arith.muli %arg11, %c1_i32_17 : i32
      %c0_i32_18 = arith.constant 0 : i32
      %15 = arith.addi %c0_i32_18, %14 : i32
      %16 = arith.index_cast %15 : i32 to index
      %c0_19 = arith.constant 0 : index
      %c0_20 = arith.constant 0 : index
      %17 = vector.load %arg1[%16, %c0_19, %c0_20] : memref<2x8x128xf32, #tpu.memory_space<vmem>>, vector<1x8x128xf32>
      %18 = vector.shape_cast %17 : vector<1x8x128xf32> to vector<8x128xf32>
      %19 = arith.truncf %18 : vector<8x128xf32> to vector<8x128xbf16>
      %cst = arith.constant dense<0.000000e+00> : vector<32x128xf32>
      %20 = tpu.matmul %0, %19, %cst {dimension_numbers = #tpu.dot_dimension_numbers<[1], [0], [0], [1], [0, 0, 1, 1], [], []>} : vector<32x8xbf16>, vector<8x128xbf16>, vector<32x128xf32> -> vector<32x128xf32>
      %21 = vector.broadcast %2 : vector<32x1xf32> to vector<32x128xf32>
      %22 = arith.addf %20, %21 : vector<32x128xf32>
      %cst_21 = arith.constant 0.000000e+00 : f32
      %cst_22 = arith.constant 6.000000e+00 : f32
      %23 = vector.broadcast %cst_21 : f32 to vector<32x128xf32>
      %24 = arith.maximumf %23, %22 : vector<32x128xf32>
      %25 = vector.broadcast %cst_22 : f32 to vector<32x128xf32>
      %26 = arith.minimumf %25, %24 : vector<32x128xf32>
      %27 = arith.truncf %26 : vector<32x128xf32> to vector<32x128xbf16>
      %c1_i32_23 = arith.constant 1 : i32
      %28 = tpu.dynamic_rotate %26 by %c1_i32_23 dim 1 : vector<32x128xf32>, i32 -> vector<32x128xf32>
      %cst_24 = arith.constant 0.000000e+00 : f32
      %29 = vector.shape_cast %10 : vector<1x128xi1> to vector<1x128xi1>
      %30 = vector.broadcast %29 : vector<1x128xi1> to vector<32x128xi1>
      %31 = vector.broadcast %cst_24 : f32 to vector<32x128xf32>
      %32 = arith.select %30, %28, %31 : vector<32x128xi1>, vector<32x128xf32>
      %33 = arith.truncf %32 : vector<32x128xf32> to vector<32x128xbf16>
      %c127_i32_25 = arith.constant 127 : i32
      %34 = tpu.dynamic_rotate %26 by %c127_i32_25 dim 1 : vector<32x128xf32>, i32 -> vector<32x128xf32>
      %cst_26 = arith.constant 0.000000e+00 : f32
      %35 = vector.shape_cast %12 : vector<1x128xi1> to vector<1x128xi1>
      %36 = vector.broadcast %35 : vector<1x128xi1> to vector<32x128xi1>
      %37 = vector.broadcast %cst_26 : f32 to vector<32x128xf32>
      %38 = arith.select %36, %34, %37 : vector<32x128xi1>, vector<32x128xf32>
      %39 = arith.truncf %38 : vector<32x128xf32> to vector<32x128xbf16>
      %40 = vector.broadcast %4 : vector<32x1xbf16> to vector<32x128xbf16>
      %41 = arith.mulf %40, %33 : vector<32x128xbf16>
      %42 = vector.broadcast %5 : vector<32x1xbf16> to vector<32x128xbf16>
      %43 = arith.mulf %42, %27 : vector<32x128xbf16>
      %44 = arith.addf %41, %43 : vector<32x128xbf16>
      %45 = vector.broadcast %6 : vector<32x1xbf16> to vector<32x128xbf16>
      %46 = arith.mulf %45, %39 : vector<32x128xbf16>
      %47 = arith.addf %44, %46 : vector<32x128xbf16>
      %48 = vector.broadcast %7 : vector<32x1xbf16> to vector<32x128xbf16>
      %49 = arith.addf %47, %48 : vector<32x128xbf16>
      %cst_27 = arith.constant 0.000000e+00 : f32
      %cst_28 = arith.constant 6.000000e+00 : f32
      %50 = arith.truncf %cst_27 : f32 to bf16
      %51 = vector.broadcast %50 : bf16 to vector<32x128xbf16>
      %52 = arith.maximumf %51, %49 : vector<32x128xbf16>
      %53 = arith.truncf %cst_28 : f32 to bf16
      %54 = vector.broadcast %53 : bf16 to vector<32x128xbf16>
      %55 = arith.minimumf %54, %52 : vector<32x128xbf16>
      %cst_29 = arith.constant dense<0.000000e+00> : vector<8x128xf32>
      %56 = tpu.matmul %1, %55, %cst_29 {dimension_numbers = #tpu.dot_dimension_numbers<[1], [0], [0], [1], [0, 0, 1, 1], [], []>} : vector<8x32xbf16>, vector<32x128xbf16>, vector<8x128xf32> -> vector<8x128xf32>
      %57 = vector.broadcast %3 : vector<8x1xf32> to vector<8x128xf32>
      %58 = arith.addf %56, %57 : vector<8x128xf32>
      %59 = arith.addf %58, %18 : vector<8x128xf32>
      %60 = arith.index_cast %15 : i32 to index
      %c0_30 = arith.constant 0 : index
      %c0_31 = arith.constant 0 : index
      %61 = vector.load %arg10[%60, %c0_30, %c0_31] : memref<2x8x128xf32, #tpu.memory_space<vmem>>, vector<1x8x128xf32>
      %62 = vector.shape_cast %61 : vector<1x8x128xf32> to vector<8x128xf32>
      %63 = vector.shape_cast %59 : vector<8x128xf32> to vector<1x8x128xf32>
      tpu.vector_store %arg10[%60, %c0_30, %c0_31], %63 {strides = array<i32>} : memref<2x8x128xf32, #tpu.memory_space<vmem>>, vector<1x8x128xf32>,
    }
    %c2_i32_16 = arith.constant 2 : i32
    return
  }
  func.func @transform_0(%arg0: i32) -> (i32, i32, i32) {
    %c0_i32 = arith.constant 0 : i32
    %c0_i32_0 = arith.constant 0 : i32
    %c0_i32_1 = arith.constant 0 : i32
    return %arg0, %c0_i32, %c0_i32_0 : i32, i32, i32
  }
  func.func @transform_1(%arg0: i32) -> (i32, i32) {
    %c0_i32 = arith.constant 0 : i32
    %c0_i32_0 = arith.constant 0 : i32
    %c0_i32_1 = arith.constant 0 : i32
    return %c0_i32, %c0_i32_0 : i32, i32
  }
  func.func @transform_2(%arg0: i32) -> (i32, i32) {
    %c0_i32 = arith.constant 0 : i32
    %c0_i32_0 = arith.constant 0 : i32
    %c0_i32_1 = arith.constant 0 : i32
    return %c0_i32, %c0_i32_0 : i32, i32
  }
  func.func @transform_3(%arg0: i32) -> (i32, i32) {
    %c0_i32 = arith.constant 0 : i32
    %c0_i32_0 = arith.constant 0 : i32
    %c0_i32_1 = arith.constant 0 : i32
    return %c0_i32, %c0_i32_0 : i32, i32
  }
  func.func @transform_4(%arg0: i32) -> (i32, i32) {
    %c0_i32 = arith.constant 0 : i32
    %c0_i32_0 = arith.constant 0 : i32
    %c0_i32_1 = arith.constant 0 : i32
    return %c0_i32, %c0_i32_0 : i32, i32
  }
  func.func @transform_5(%arg0: i32) -> (i32, i32) {
    %c0_i32 = arith.constant 0 : i32
    %c0_i32_0 = arith.constant 0 : i32
    %c0_i32_1 = arith.constant 0 : i32
    return %c0_i32, %c0_i32_0 : i32, i32
  }
  func.func @transform_6(%arg0: i32) -> (i32, i32) {
    %c0_i32 = arith.constant 0 : i32
    %c0_i32_0 = arith.constant 0 : i32
    %c0_i32_1 = arith.constant 0 : i32
    return %c0_i32, %c0_i32_0 : i32, i32
  }
  func.func @transform_7(%arg0: i32) -> (i32, i32) {
    %c0_i32 = arith.constant 0 : i32
    %c0_i32_0 = arith.constant 0 : i32
    %c0_i32_1 = arith.constant 0 : i32
    return %c0_i32, %c0_i32_0 : i32, i32
  }
  func.func @transform_8(%arg0: i32) -> (i32, i32) {
    %c0_i32 = arith.constant 0 : i32
    %c0_i32_0 = arith.constant 0 : i32
    %c0_i32_1 = arith.constant 0 : i32
    return %c0_i32, %c0_i32_0 : i32, i32
  }
  func.func @transform_9(%arg0: i32) -> (i32, i32, i32) {
    %c0_i32 = arith.constant 0 : i32
    %c0_i32_0 = arith.constant 0 : i32
    %c0_i32_1 = arith.constant 0 : i32
    return %arg0, %c0_i32, %c0_i32_0 : i32, i32, i32
  }
}

</mosaic_0001>

<llo_original>
// kernel: tpu_custom_call.1
$region0: #{tpu_custom_call.1}
  #allocation0 [shape = 'u32[]', space=smem, size = 0x4, offset = 0x4, fixed_abs, tag = 'smem constant byte address 0x4 - core index']
  #allocation1 [shape = 'u32[144,128]{1,0:T(1,128)}', space=vmem, size = 0x12000, scoped, tag = 'internal scratch']
  %s0 = inlined_call_operand.vmem [shape: f32[8,8,128], index: 0, kind: input, shape index: {}]
  %s1 = inlined_call_operand.vmem [shape: bf16[32,8], index: 1, kind: input, shape index: {}]
  %s2 = inlined_call_operand.vmem [shape: f32[32,1], index: 2, kind: input, shape index: {}]
  %s3 = inlined_call_operand.vmem [shape: bf16[32,1], index: 3, kind: input, shape index: {}]
  %s4 = inlined_call_operand.vmem [shape: bf16[32,1], index: 4, kind: input, shape index: {}]
  %s5 = inlined_call_operand.vmem [shape: bf16[32,1], index: 5, kind: input, shape index: {}]
  %s6 = inlined_call_operand.vmem [shape: bf16[32,1], index: 6, kind: input, shape index: {}]
  %s7 = inlined_call_operand.vmem [shape: bf16[8,32], index: 7, kind: input, shape index: {}]
  %s8 = inlined_call_operand.vmem [shape: f32[8,1], index: 8, kind: input, shape index: {}]
  %s9 = inlined_call_operand.hbm [shape: f32[8,8,128], index: 9, kind: output, shape index: {}]
  %s10 = sld [smem:[#allocation0]]
  $region76: #{tpu_custom_call.1} parent=0
    _
  %s12 = ssub.s32 1, %s10
  %s13 = scalar_select 0, %s12, %s10
  $region1: #{tpu_custom_call.1} parent=0
    #allocation2 [shape = 'u8[16384]{0}', space=vmem, size = 0x4000, scoped, tag = 'output window, operand 0']
    #allocation3 [shape = 's32[2]{0}', space=sflag, size = 0x8, scoped, tag = 'scoped memory for tpu_custom_call.1']
    %14 = vsyncpa [#allocation3], 0
    %s15 = scalar_lea.sflag [#allocation3], 1
    %16 = vsyncpa %s15, 0
    loop: start=0, step=1, limit=6
    $region2: #{tpu_custom_call.1} parent=1 // loop_pre_header
      _
    $region3: #{tpu_custom_call.1} parent=1 // loop_header
      %s18 = sphi 0, %s22
      %p19 = scmp.ge.s32.totalorder %s18, 6
      %s28 = sphi 0, %s30
      %s31 = sphi 0, %s28
      %s32 = sphi 0, %s31
      %s48 = sphi 0, %s32
      %s52 = sphi 0, %s52
      %s54 = sphi 0, %s52
      %s55 = sphi 0, %s54
      %s69 = sphi 0, %s55
      %s73 = sphi 0, %s73
      %s75 = sphi 0, %s73
      %s76 = sphi 0, %s75
      %s90 = sphi 0, %s76
      %s94 = sphi 0, %s94
      %s96 = sphi 0, %s94
      %s97 = sphi 0, %s96
      %s111 = sphi 0, %s97
      %s115 = sphi 0, %s115
      %s117 = sphi 0, %s115
      %s118 = sphi 0, %s117
      %s132 = sphi 0, %s118
      %s136 = sphi 0, %s136
      %s138 = sphi 0, %s136
      %s139 = sphi 0, %s138
      %s153 = sphi 0, %s139
      %s157 = sphi 0, %s157
      %s159 = sphi 0, %s157
      %s160 = sphi 0, %s159
      %s174 = sphi 0, %s160
      %s178 = sphi 0, %s178
      %s180 = sphi 0, %s178
      %s181 = sphi 0, %s180
      %s195 = sphi 0, %s181
      %s199 = sphi 0, %s199
      %s201 = sphi 0, %s199
      %s202 = sphi 0, %s201
      %s216 = sphi 0, %s202
      %s222 = sphi 0, %s224
      %s225 = sphi 0, %s222
      %s226 = sphi 0, %s225
      %s242 = sphi 0, %s226
    $region4: #{tpu_custom_call.1} parent=1 // loop_header_branch
      %21 = sbr.rel (%p19) target = $region8
    $region5: #{tpu_custom_call.1} parent=1 // loop_body
      %s23 = ssub.s32 %s18, 1
      %s24 = ssub.s32 %s18, 2
      %s25 = sadd.s32 %s18, 1
      %s26 = ssub.s32 %s18, %s25
      %p27 = scmp.eq.s32.totalorder %s26, 0
      %s29 = sadd.s32 %s28, 1
      %s30 = scalar_select %p27, %s28, %s29
      %p33 = pneg %p27
      %p34 = scmp.eq.s32.totalorder %s18, 3
      %p35 = por %p33, %p34
      %p36 = scmp.ne.s32.totalorder %s28, %s31
      %p37 = scmp.eq.s32.totalorder %s18, 0
      %p38 = por %p36, %p37
      %p39 = scmp.ne.s32.totalorder %s28, %s31
      %p40 = scmp.eq.s32.totalorder %s23, 3
      %p41 = por %p39, %p40
      %p42 = scmp.ne.s32.totalorder %s31, %s32
      %p43 = scmp.eq.s32.totalorder %s23, 0
      %p44 = por %p42, %p43
      %p45 = scmp.ne.s32.totalorder %s31, %s32
      %p46 = scmp.eq.s32.totalorder %s24, 3
      %p47 = por %p45, %p46
      %p49 = scmp.ne.s32.totalorder %s32, %s48
      %p50 = scmp.eq.s32.totalorder %s24, 0
      %p51 = por %p49, %p50
      %s53 = sadd.s32 %s52, 1
      %p56 = scmp.eq.s32.totalorder %s18, 3
      %p57 = scmp.ne.s32.totalorder %s52, %s54
      %p58 = scmp.eq.s32.totalorder %s18, 0
      %p59 = por %p57, %p58
      %p60 = scmp.ne.s32.totalorder %s52, %s54
      %p61 = scmp.eq.s32.totalorder %s23, 3
      %p62 = por %p60, %p61
      %p63 = scmp.ne.s32.totalorder %s54, %s55
      %p64 = scmp.eq.s32.totalorder %s23, 0
      %p65 = por %p63, %p64
      %p66 = scmp.ne.s32.totalorder %s54, %s55
      %p67 = scmp.eq.s32.totalorder %s24, 3
      %p68 = por %p66, %p67
      %p70 = scmp.ne.s32.totalorder %s55, %s69
      %p71 = scmp.eq.s32.totalorder %s24, 0
      %p72 = por %p70, %p71
      %s74 = sadd.s32 %s73, 1
      %p77 = scmp.eq.s32.totalorder %s18, 3
      %p78 = scmp.ne.s32.totalorder %s73, %s75
      %p79 = scmp.eq.s32.totalorder %s18, 0
      %p80 = por %p78, %p79
      %p81 = scmp.ne.s32.totalorder %s73, %s75
      %p82 = scmp.eq.s32.totalorder %s23, 3
      %p83 = por %p81, %p82
      %p84 = scmp.ne.s32.totalorder %s75, %s76
      %p85 = scmp.eq.s32.totalorder %s23, 0
      %p86 = por %p84, %p85
      %p87 = scmp.ne.s32.totalorder %s75, %s76
      %p88 = scmp.eq.s32.totalorder %s24, 3
      %p89 = por %p87, %p88
      %p91 = scmp.ne.s32.totalorder %s76, %s90
      %p92 = scmp.eq.s32.totalorder %s24, 0
      %p93 = por %p91, %p92
      %s95 = sadd.s32 %s94, 1
      %p98 = scmp.eq.s32.totalorder %s18, 3
      %p99 = scmp.ne.s32.totalorder %s94, %s96
      %p100 = scmp.eq.s32.totalorder %s18, 0
      %p101 = por %p99, %p100
      %p102 = scmp.ne.s32.totalorder %s94, %s96
      %p103 = scmp.eq.s32.totalorder %s23, 3
      %p104 = por %p102, %p103
      %p105 = scmp.ne.s32.totalorder %s96, %s97
      %p106 = scmp.eq.s32.totalorder %s23, 0
      %p107 = por %p105, %p106
      %p108 = scmp.ne.s32.totalorder %s96, %s97
      %p109 = scmp.eq.s32.totalorder %s24, 3
      %p110 = por %p108, %p109
      %p112 = scmp.ne.s32.totalorder %s97, %s111
      %p113 = scmp.eq.s32.totalorder %s24, 0
      %p114 = por %p112, %p113
      %s116 = sadd.s32 %s115, 1
      %p119 = scmp.eq.s32.totalorder %s18, 3
      %p120 = scmp.ne.s32.totalorder %s115, %s117
      %p121 = scmp.eq.s32.totalorder %s18, 0
      %p122 = por %p120, %p121
      %p123 = scmp.ne.s32.totalorder %s115, %s117
      %p124 = scmp.eq.s32.totalorder %s23, 3
      %p125 = por %p123, %p124
      %p126 = scmp.ne.s32.totalorder %s117, %s118
      %p127 = scmp.eq.s32.totalorder %s23, 0
      %p128 = por %p126, %p127
      %p129 = scmp.ne.s32.totalorder %s117, %s118
      %p130 = scmp.eq.s32.totalorder %s24, 3
      %p131 = por %p129, %p130
      %p133 = scmp.ne.s32.totalorder %s118, %s132
      %p134 = scmp.eq.s32.totalorder %s24, 0
      %p135 = por %p133, %p134
      %s137 = sadd.s32 %s136, 1
      %p140 = scmp.eq.s32.totalorder %s18, 3
      %p141 = scmp.ne.s32.totalorder %s136, %s138
      %p142 = scmp.eq.s32.totalorder %s18, 0
      %p143 = por %p141, %p142
      %p144 = scmp.ne.s32.totalorder %s136, %s138
      %p145 = scmp.eq.s32.totalorder %s23, 3
      %p146 = por %p144, %p145
      %p147 = scmp.ne.s32.totalorder %s138, %s139
      %p148 = scmp.eq.s32.totalorder %s23, 0
      %p149 = por %p147, %p148
      %p150 = scmp.ne.s32.totalorder %s138, %s139
      %p151 = scmp.eq.s32.totalorder %s24, 3
      %p152 = por %p150, %p151
      %p154 = scmp.ne.s32.totalorder %s139, %s153
      %p155 = scmp.eq.s32.totalorder %s24, 0
      %p156 = por %p154, %p155
      %s158 = sadd.s32 %s157, 1
      %p161 = scmp.eq.s32.totalorder %s18, 3
      %p162 = scmp.ne.s32.totalorder %s157, %s159
      %p163 = scmp.eq.s32.totalorder %s18, 0
      %p164 = por %p162, %p163
      %p165 = scmp.ne.s32.totalorder %s157, %s159
      %p166 = scmp.eq.s32.totalorder %s23, 3
      %p167 = por %p165, %p166
      %p168 = scmp.ne.s32.totalorder %s159, %s160
      %p169 = scmp.eq.s32.totalorder %s23, 0
      %p170 = por %p168, %p169
      %p171 = scmp.ne.s32.totalorder %s159, %s160
      %p172 = scmp.eq.s32.totalorder %s24, 3
      %p173 = por %p171, %p172
      %p175 = scmp.ne.s32.totalorder %s160, %s174
      %p176 = scmp.eq.s32.totalorder %s24, 0
      %p177 = por %p175, %p176
      %s179 = sadd.s32 %s178, 1
      %p182 = scmp.eq.s32.totalorder %s18, 3
      %p183 = scmp.ne.s32.totalorder %s178, %s180
      %p184 = scmp.eq.s32.totalorder %s18, 0
      %p185 = por %p183, %p184
      %p186 = scmp.ne.s32.totalorder %s178, %s180
      %p187 = scmp.eq.s32.totalorder %s23, 3
      %p188 = por %p186, %p187
      %p189 = scmp.ne.s32.totalorder %s180, %s181
      %p190 = scmp.eq.s32.totalorder %s23, 0
      %p191 = por %p189, %p190
      %p192 = scmp.ne.s32.totalorder %s180, %s181
      %p193 = scmp.eq.s32.totalorder %s24, 3
      %p194 = por %p192, %p193
      %p196 = scmp.ne.s32.totalorder %s181, %s195
      %p197 = scmp.eq.s32.totalorder %s24, 0
      %p198 = por %p196, %p197
      %s200 = sadd.s32 %s199, 1
      %p203 = scmp.eq.s32.totalorder %s18, 3
      %p204 = scmp.ne.s32.totalorder %s199, %s201
      %p205 = scmp.eq.s32.totalorder %s18, 0
      %p206 = por %p204, %p205
      %p207 = scmp.ne.s32.totalorder %s199, %s201
      %p208 = scmp.eq.s32.totalorder %s23, 3
      %p209 = por %p207, %p208
      %p210 = scmp.ne.s32.totalorder %s201, %s202
      %p211 = scmp.eq.s32.totalorder %s23, 0
      %p212 = por %p210, %p211
      %p213 = scmp.ne.s32.totalorder %s201, %s202
      %p214 = scmp.eq.s32.totalorder %s24, 3
      %p215 = por %p213, %p214
      %p217 = scmp.ne.s32.totalorder %s202, %s216
      %p218 = scmp.eq.s32.totalorder %s24, 0
      %p219 = por %p217, %p218
      %s220 = ssub.s32 %s18, %s25
      %p221 = scmp.eq.s32.totalorder %s220, 0
      %s223 = sadd.s32 %s222, 1
      %s224 = scalar_select %p221, %s222, %s223
      %p227 = pneg %p221
      %p228 = scmp.eq.s32.totalorder %s18, 3
      %p229 = por %p227, %p228
      %p230 = scmp.ne.s32.totalorder %s222, %s225
      %p231 = scmp.eq.s32.totalorder %s18, 0
      %p232 = por %p230, %p231
      %p233 = scmp.ne.s32.totalorder %s222, %s225
      %p234 = scmp.eq.s32.totalorder %s23, 3
      %p235 = por %p233, %p234
      %p236 = scmp.ne.s32.totalorder %s225, %s226
      %p237 = scmp.eq.s32.totalorder %s23, 0
      %p238 = por %p236, %p237
      %p239 = scmp.ne.s32.totalorder %s225, %s226
      %p240 = scmp.eq.s32.totalorder %s24, 3
      %p241 = por %p239, %p240
      %p243 = scmp.ne.s32.totalorder %s226, %s242
      %p244 = scmp.eq.s32.totalorder %s24, 0
      %p245 = por %p243, %p244
      %p246 = scmp.le.s32.totalorder 1, %s18
      %p247 = scmp.lt.s32.totalorder %s18, 5
      %p248 = pnand %p246, %p247
      %p249 = pneg %p248
      // Predicated region
      $region9: #{tpu_custom_call.1} parent=5 // pred_check
        _
      $region10: #{tpu_custom_call.1} parent=5 // pred_check_branch
        %251 = sbr.rel (%p248) target = $region12
      $region11: #{tpu_custom_call.1} parent=5 // pred_region
        %s252 = ssub.s32 %s18, 1
        // Predicated region
        $region13: #{tpu_custom_call.1} parent=11 // pred_check
          %p253 = pneg %p65
        $region14: #{tpu_custom_call.1} parent=11 // pred_check_branch
          %255 = sbr.rel (%p253) target = $region16
        $region15: #{tpu_custom_call.1} parent=11 // pred_region
          _
        $region16: #{tpu_custom_call.1} parent=11 // pred_fallthru
          _
        // Predicated region
        $region17: #{tpu_custom_call.1} parent=11 // pred_check
          %p256 = pneg %p86
        $region18: #{tpu_custom_call.1} parent=11 // pred_check_branch
          %258 = sbr.rel (%p256) target = $region20
        $region19: #{tpu_custom_call.1} parent=11 // pred_region
          _
        $region20: #{tpu_custom_call.1} parent=11 // pred_fallthru
          _
        // Predicated region
        $region21: #{tpu_custom_call.1} parent=11 // pred_check
          %p259 = pneg %p107
        $region22: #{tpu_custom_call.1} parent=11 // pred_check_branch
          %261 = sbr.rel (%p259) target = $region24
        $region23: #{tpu_custom_call.1} parent=11 // pred_region
          _
        $region24: #{tpu_custom_call.1} parent=11 // pred_fallthru
          _
        // Predicated region
        $region25: #{tpu_custom_call.1} parent=11 // pred_check
          %p262 = pneg %p128
        $region26: #{tpu_custom_call.1} parent=11 // pred_check_branch
          %264 = sbr.rel (%p262) target = $region28
        $region27: #{tpu_custom_call.1} parent=11 // pred_region
          _
        $region28: #{tpu_custom_call.1} parent=11 // pred_fallthru
          _
        // Predicated region
        $region29: #{tpu_custom_call.1} parent=11 // pred_check
          %p265 = pneg %p149
        $region30: #{tpu_custom_call.1} parent=11 // pred_check_branch
          %267 = sbr.rel (%p265) target = $region32
        $region31: #{tpu_custom_call.1} parent=11 // pred_region
          _
        $region32: #{tpu_custom_call.1} parent=11 // pred_fallthru
          _
        // Predicated region
        $region33: #{tpu_custom_call.1} parent=11 // pred_check
          %p268 = pneg %p170
        $region34: #{tpu_custom_call.1} parent=11 // pred_check_branch
          %270 = sbr.rel (%p268) target = $region36
        $region35: #{tpu_custom_call.1} parent=11 // pred_region
          _
        $region36: #{tpu_custom_call.1} parent=11 // pred_fallthru
          _
        // Predicated region
        $region37: #{tpu_custom_call.1} parent=11 // pred_check
          %p271 = pneg %p191
        $region38: #{tpu_custom_call.1} parent=11 // pred_check_branch
          %273 = sbr.rel (%p271) target = $region40
        $region39: #{tpu_custom_call.1} parent=11 // pred_region
          _
        $region40: #{tpu_custom_call.1} parent=11 // pred_fallthru
          _
        // Predicated region
        $region41: #{tpu_custom_call.1} parent=11 // pred_check
          %p274 = pneg %p212
        $region42: #{tpu_custom_call.1} parent=11 // pred_check_branch
          %276 = sbr.rel (%p274) target = $region44
        $region43: #{tpu_custom_call.1} parent=11 // pred_region
          _
        $region44: #{tpu_custom_call.1} parent=11 // pred_fallthru
          _
      $region12: #{tpu_custom_call.1} parent=5 // pred_fallthru
        _
      %p277 = scmp.lt.s32.totalorder %s18, 4
      // Predicated region
      $region45: #{tpu_custom_call.1} parent=5 // pred_check
        %p278 = pneg %p277
      $region46: #{tpu_custom_call.1} parent=5 // pred_check_branch
        %280 = sbr.rel (%p278) target = $region48
      $region47: #{tpu_custom_call.1} parent=5 // pred_region
        // Predicated region
        $region49: #{tpu_custom_call.1} parent=47 // pred_check
          %p281 = pneg %p38
        $region50: #{tpu_custom_call.1} parent=47 // pred_check_branch
          %283 = sbr.rel (%p281) target = $region52
        $region51: #{tpu_custom_call.1} parent=47 // pred_region
          %s284 = smul.u32 2, %s18
          %p285 = scmp.lt.s32.totalorder %s284, 7
          %s286 = scalar_select %p285, %s284, 7
          %s287 = smul.addr %s286, 8
          %s288 = scalar_lea.vmem %s0, %s287
          %s289 = smul.u32 2, %s18
        $region52: #{tpu_custom_call.1} parent=47 // pred_fallthru
          _
      $region48: #{tpu_custom_call.1} parent=5 // pred_fallthru
        _
      %p290 = scmp.le.s32.totalorder 1, %s18
      %p291 = scmp.lt.s32.totalorder %s18, 5
      %p292 = pnand %p290, %p291
      %p293 = pneg %p292
      // Predicated region
      $region53: #{tpu_custom_call.1} parent=5 // pred_check
        _
      $region54: #{tpu_custom_call.1} parent=5 // pred_check_branch
        %295 = sbr.rel (%p292) target = $region56
      $region55: #{tpu_custom_call.1} parent=5 // pred_region
        %s296 = ssub.s32 %s18, 1
        %s297 = smul.u32 2, %s23
        %p298 = scmp.lt.s32.totalorder %s297, 7
        %s299 = scalar_select %p298, %s297, 7
        %s300 = smul.addr %s299, 8
        %s301 = scalar_lea.vmem %s0, %s300
        %p302 = pneg %p44
        %p303 = pneg %p41
        %p304 = pneg %p65
        %p305 = pneg %p62
        %p306 = pneg %p86
        %p307 = pneg %p83
        %p308 = pneg %p107
        %p309 = pneg %p104
        %p310 = pneg %p128
        %p311 = pneg %p125
        %p312 = pneg %p149
        %p313 = pneg %p146
        %p314 = pneg %p170
        %p315 = pneg %p167
        %p316 = pneg %p191
        %p317 = pneg %p188
        %p318 = pneg %p212
        %p319 = pneg %p209
        %p320 = pneg %p238
        %p321 = pneg %p235
        %s322 = sand.u32 %s225, 1
        %s323 = scalar_lea.sflag [#allocation3], %s322
        %s324 = sand.u32 %s225, 1
        %s325 = smul.addr %s324, 16
        %s326 = scalar_lea.vmem [#allocation2], %s325
        %s327 = smul.u32 2, %s23
        %p328 = scmp.lt.s32.totalorder %s327, 7
        %s329 = scalar_select %p328, %s327, 7
        %s330 = smul.addr %s329, 8
        %s331 = scalar_lea.vmem %s0, %s330
        %s332 = smul.u32 2, %s23
        %s333 = smul.u32 2, %s23
        %v336 = vld [vmem:[%s1] sm:$0xf]
        %v337 = vld [vmem:[%s1 + $0x4] sm:$0xf]
        %v338 = vld [vmem:[%s1 + $0x8] sm:$0xf]
        %v339 = vld [vmem:[%s1 + $0xc] sm:$0xf]
        %v340 = vld [vmem:[%s7] sm:$0xf]
        %v341 = vld [vmem:[%s2] sm:$0xff]
        %v342 = vld [vmem:[%s2 + $0x8] sm:$0xff]
        %v343 = vld [vmem:[%s2 + $0x10] sm:$0xff]
        %v344 = vld [vmem:[%s2 + $0x18] sm:$0xff]
        %v345 = vld [vmem:[%s8] sm:$0xff]
        %v346 = vld [vmem:[%s3] sm:$0xf]
        %v347 = vld [vmem:[%s3 + $0x4] sm:$0xf]
        %v348 = vld [vmem:[%s3 + $0x8] sm:$0xf]
        %v349 = vld [vmem:[%s3 + $0xc] sm:$0xf]
        %v350 = vld [vmem:[%s4] sm:$0xf]
        %v351 = vld [vmem:[%s4 + $0x4] sm:$0xf]
        %v352 = vld [vmem:[%s4 + $0x8] sm:$0xf]
        %v353 = vld [vmem:[%s4 + $0xc] sm:$0xf]
        %v354 = vld [vmem:[%s5] sm:$0xf]
        %v355 = vld [vmem:[%s5 + $0x4] sm:$0xf]
        %v356 = vld [vmem:[%s5 + $0x8] sm:$0xf]
        %v357 = vld [vmem:[%s5 + $0xc] sm:$0xf]
        %v358 = vld [vmem:[%s6] sm:$0xf]
        %v359 = vld [vmem:[%s6 + $0x4] sm:$0xf]
        %v360 = vld [vmem:[%s6 + $0x8] sm:$0xf]
        %v361 = vld [vmem:[%s6 + $0xc] sm:$0xf]
        %v362 = vlaneseq
        %v363 = vand.u32 %v362, 127
        %vm364 = vcmp.gt.s32.totalorder %v363, 0
        %vm365 = vcmp.lt.s32.totalorder %v363, 127
        loop: start=0, step=1, limit=2
        $region57: #{tpu_custom_call.1} parent=55 // loop_pre_header
          _
        $region58: #{tpu_custom_call.1} parent=55 // loop_header
          %s367 = sphi 0, %s371
          %p368 = scmp.ge.s32.totalorder %s367, 2
        $region59: #{tpu_custom_call.1} parent=55 // loop_header_branch
          %370 = sbr.rel (%p368) target = $region63
        $region60: #{tpu_custom_call.1} parent=55 // loop_body
          %s372 = smul.u32 %s367, 8
          %s373 = scalar_lea.vmem %s331, %s372
          %v374 = vld [vmem:[%s373] sm:$0xff]
          %v375 = vpack.c.bf16 %v374, %v374
          %377 = vset.pattern.permute.xlu0 0
          %378 = vperm.xlu0 %377, %v341
          %v379 = vpop.permute.xlu0 %378
          %382 = vset.pattern.permute.xlu0 0
          %383 = vperm.xlu0 %382, %v342
          %v384 = vpop.permute.xlu0 %383
          %387 = vset.pattern.permute.xlu0 0
          %388 = vperm.xlu0 %387, %v343
          %v389 = vpop.permute.xlu0 %388
          %392 = vset.pattern.permute.xlu0 0
          %393 = vperm.xlu0 %392, %v344
          %v394 = vpop.permute.xlu0 %393
          %v400 = vunpack.c.l.b16 %v336
          %v401 = vunpack.c.l.b16 %v337
          %v402 = vunpack.c.l.b16 %v338
          %v403 = vunpack.c.l.b16 %v339
          %v404 = vpack.c.b16 %v401, %v400
          %v405 = vpack.c.b16 %v403, %v402
          %vm406 = vcmask 64512
          %v408 = vsel %vm406, %v404, 0
          %v411 = vsel %vm406, %v405, 0
          %vm413 = vcmask 1043456
          %v415 = vsel %vm413, %v375, 0
          %417 = vmatprep.subr.bf16.mxu0 0
          %418 = vmatpush1.bf16.msra.mxu0 0
          %419 = vmatprep.subr.bf16.mxu0 0
          %420 = vmatpush1.bf16.msra.mxu0 0
          %421 = vmatprep.subr.bf16.mxu0 0
          %422 = vmatpush1.bf16.msra.mxu0 0
          %423 = vmatprep.subr.bf16.mxu0 0
          %424 = vmatpush1.bf16.msra.mxu0 0
          %425 = vmatprep.subr.bf16.mxu0 0
          %426 = vmatpush1.bf16.msra.mxu0 0
          %427 = vmatprep.subr.bf16.mxu0 0
          %428 = vmatpush1.bf16.msra.mxu0 0
          %429 = vmatprep.subr.bf16.mxu0 0
          %430 = vmatpush1.bf16.msra.mxu0 0
          %431 = vmatprep.subr.bf16.mxu0 0
          %432 = vmatpush1.bf16.msra.mxu0 %v415
          %433 = vmatprep.subr.bf16.mxu0 0
          %434 = vmatpush2.bf16.msra.mxu0 0
          %435 = vmatprep.subr.bf16.mxu0 0
          %436 = vmatpush2.bf16.msra.mxu0 0
          %437 = vmatprep.subr.bf16.mxu0 0
          %438 = vmatpush2.bf16.msra.mxu0 0
          %439 = vmatprep.subr.bf16.mxu0 0
          %440 = vmatpush2.bf16.msra.mxu0 0
          %441 = vmatprep.subr.bf16.mxu0 0
          %442 = vmatpush2.bf16.msra.mxu0 0
          %443 = vmatprep.subr.bf16.mxu0 0
          %444 = vmatpush2.bf16.msra.mxu0 0
          %445 = vmatprep.subr.bf16.mxu0 0
          %446 = vmatpush2.bf16.msra.mxu0 0
          %447 = vmatprep.subr.bf16.mxu0 0
          %448 = vmatpush2.bf16.msra.mxu0 0
          %449 = vmatprep.mubr.bf16.mxu0 0
          %450 = vmatmul.mubr.bf16.gmra.mxu0 %v408
          %v451 = vpop.f32.mrf.mxu0
          %v452 = vadd.f32 %v379, %v451
          %v453 = vpop.f32.mrf.mxu0
          %v454 = vpop.f32.mrf.mxu0
          %v455 = vadd.f32 %v384, %v454
          %v456 = vpop.f32.mrf.mxu0
          %457 = vmatprep.mubr.bf16.mxu0 0
          %458 = vmatmul.mubr.bf16.gmra.mxu0 %v411
          %v459 = vpop.f32.mrf.mxu0
          %v460 = vadd.f32 %v389, %v459
          %v461 = vpop.f32.mrf.mxu0
          %v462 = vpop.f32.mrf.mxu0
          %v463 = vadd.f32 %v394, %v462
          %v464 = vpop.f32.mrf.mxu0
          %465 = vdwg.mxu0
          %v466 = vmax.f32 %v452, 0.0
          %v467 = vmax.f32 %v455, 0.0
          %v468 = vmax.f32 %v460, 0.0
          %v469 = vmax.f32 %v463, 0.0
          %v470 = vmin.f32 %v466, 6.0
          %v471 = vmin.f32 %v467, 6.0
          %v472 = vmin.f32 %v468, 6.0
          %v473 = vmin.f32 %v469, 6.0
          %v474 = vpack.c.bf16 %v471, %v470
          %v475 = vpack.c.bf16 %v473, %v472
          %476 = vrot.lane.b32.xlu0 %v470, 1
          %v477 = vpop.permute.xlu0 %476
          %478 = vrot.lane.b32.xlu0 %v471, 1
          %v479 = vpop.permute.xlu0 %478
          %480 = vrot.lane.b32.xlu0 %v472, 1
          %v481 = vpop.permute.xlu0 %480
          %482 = vrot.lane.b32.xlu0 %v473, 1
          %v483 = vpop.permute.xlu0 %482
          %v484 = vsel %vm364, 1, 0
          %vm485 = vcmp.eq.s32.totalorder %v484, 1
          %v486 = vsel %vm485, %v477, 0.0
          %v487 = vsel %vm485, %v479, 0.0
          %v488 = vsel %vm485, %v481, 0.0
          %v489 = vsel %vm485, %v483, 0.0
          %v490 = vpack.c.bf16 %v487, %v486
          %v491 = vpack.c.bf16 %v489, %v488
          %492 = vrot.lane.b32.xlu0 %v470, 127
          %v493 = vpop.permute.xlu0 %492
          %494 = vrot.lane.b32.xlu0 %v471, 127
          %v495 = vpop.permute.xlu0 %494
          %496 = vrot.lane.b32.xlu0 %v472, 127
          %v497 = vpop.permute.xlu0 %496
          %498 = vrot.lane.b32.xlu0 %v473, 127
          %v499 = vpop.permute.xlu0 %498
          %v500 = vsel %vm365, 1, 0
          %vm501 = vcmp.eq.s32.totalorder %v500, 1
          %v502 = vsel %vm501, %v493, 0.0
          %v503 = vsel %vm501, %v495, 0.0
          %v504 = vsel %vm501, %v497, 0.0
          %v505 = vsel %vm501, %v499, 0.0
          %v506 = vpack.c.bf16 %v503, %v502
          %v507 = vpack.c.bf16 %v505, %v504
          %509 = vset.pattern.permute.xlu0 0
          %510 = vperm.xlu0 %509, %v346
          %v511 = vpop.permute.xlu0 %510
          %v514 = vunpack.c.l.s4 839922192
          %v515 = vunpack.c.0.s8 %v514
          %v516 = vlaneseq
          %v517 = vshrl.u32 %v516, 7
          %v518 = vsub.s32 %v515, %v517
          %v519 = vrot.slane %v511, %v518
          %521 = vset.pattern.permute.xlu0 0
          %522 = vperm.xlu0 %521, %v347
          %v523 = vpop.permute.xlu0 %522
          %v526 = vunpack.c.l.s4 839922192
          %v527 = vunpack.c.0.s8 %v526
          %v528 = vlaneseq
          %v529 = vshrl.u32 %v528, 7
          %v530 = vsub.s32 %v527, %v529
          %v531 = vrot.slane %v523, %v530
          %533 = vset.pattern.permute.xlu0 0
          %534 = vperm.xlu0 %533, %v348
          %v535 = vpop.permute.xlu0 %534
          %v538 = vunpack.c.l.s4 839922192
          %v539 = vunpack.c.0.s8 %v538
          %v540 = vlaneseq
          %v541 = vshrl.u32 %v540, 7
          %v542 = vsub.s32 %v539, %v541
          %v543 = vrot.slane %v535, %v542
          %545 = vset.pattern.permute.xlu0 0
          %546 = vperm.xlu0 %545, %v349
          %v547 = vpop.permute.xlu0 %546
          %v550 = vunpack.c.l.s4 839922192
          %v551 = vunpack.c.0.s8 %v550
          %v552 = vlaneseq
          %v553 = vshrl.u32 %v552, 7
          %v554 = vsub.s32 %v551, %v553
          %v555 = vrot.slane %v547, %v554
          %v558 = vunpack.c.l.b16 %v490
          %v559 = vunpack.c.h.b16 %v490
          %v560 = vunpack.c.l.b16 %v491
          %v561 = vunpack.c.h.b16 %v491
          %v562 = vpack.c.b16 %v558, %v558
          %v563 = vpack.c.b16 %v559, %v559
          %v564 = vpack.c.b16 %v560, %v560
          %v565 = vpack.c.b16 %v561, %v561
          %v570 = vmul.bf16 %v519, %v562
          %v571 = vmul.bf16 %v531, %v563
          %v572 = vmul.bf16 %v543, %v564
          %v573 = vmul.bf16 %v555, %v565
          %575 = vset.pattern.permute.xlu0 0
          %576 = vperm.xlu0 %575, %v350
          %v577 = vpop.permute.xlu0 %576
          %v580 = vunpack.c.l.s4 839922192
          %v581 = vunpack.c.0.s8 %v580
          %v582 = vlaneseq
          %v583 = vshrl.u32 %v582, 7
          %v584 = vsub.s32 %v581, %v583
          %v585 = vrot.slane %v577, %v584
          %587 = vset.pattern.permute.xlu0 0
          %588 = vperm.xlu0 %587, %v351
          %v589 = vpop.permute.xlu0 %588
          %v592 = vunpack.c.l.s4 839922192
          %v593 = vunpack.c.0.s8 %v592
          %v594 = vlaneseq
          %v595 = vshrl.u32 %v594, 7
          %v596 = vsub.s32 %v593, %v595
          %v597 = vrot.slane %v589, %v596
          %599 = vset.pattern.permute.xlu0 0
          %600 = vperm.xlu0 %599, %v352
          %v601 = vpop.permute.xlu0 %600
          %v604 = vunpack.c.l.s4 839922192
          %v605 = vunpack.c.0.s8 %v604
          %v606 = vlaneseq
          %v607 = vshrl.u32 %v606, 7
          %v608 = vsub.s32 %v605, %v607
          %v609 = vrot.slane %v601, %v608
          %611 = vset.pattern.permute.xlu0 0
          %612 = vperm.xlu0 %611, %v353
          %v613 = vpop.permute.xlu0 %612
          %v616 = vunpack.c.l.s4 839922192
          %v617 = vunpack.c.0.s8 %v616
          %v618 = vlaneseq
          %v619 = vshrl.u32 %v618, 7
          %v620 = vsub.s32 %v617, %v619
          %v621 = vrot.slane %v613, %v620
          %v624 = vunpack.c.l.b16 %v474
          %v625 = vunpack.c.h.b16 %v474
          %v626 = vunpack.c.l.b16 %v475
          %v627 = vunpack.c.h.b16 %v475
          %v628 = vpack.c.b16 %v624, %v624
          %v629 = vpack.c.b16 %v625, %v625
          %v630 = vpack.c.b16 %v626, %v626
          %v631 = vpack.c.b16 %v627, %v627
          %v636 = vmul.bf16 %v585, %v628
          %v637 = vmul.bf16 %v597, %v629
          %v638 = vmul.bf16 %v609, %v630
          %v639 = vmul.bf16 %v621, %v631
          %v640 = vadd.bf16 %v570, %v636
          %v641 = vadd.bf16 %v571, %v637
          %v642 = vadd.bf16 %v572, %v638
          %v643 = vadd.bf16 %v573, %v639
          %645 = vset.pattern.permute.xlu0 0
          %646 = vperm.xlu0 %645, %v354
          %v647 = vpop.permute.xlu0 %646
          %v650 = vunpack.c.l.s4 839922192
          %v651 = vunpack.c.0.s8 %v650
          %v652 = vlaneseq
          %v653 = vshrl.u32 %v652, 7
          %v654 = vsub.s32 %v651, %v653
          %v655 = vrot.slane %v647, %v654
          %657 = vset.pattern.permute.xlu0 0
          %658 = vperm.xlu0 %657, %v355
          %v659 = vpop.permute.xlu0 %658
          %v662 = vunpack.c.l.s4 839922192
          %v663 = vunpack.c.0.s8 %v662
          %v664 = vlaneseq
          %v665 = vshrl.u32 %v664, 7
          %v666 = vsub.s32 %v663, %v665
          %v667 = vrot.slane %v659, %v666
          %669 = vset.pattern.permute.xlu0 0
          %670 = vperm.xlu0 %669, %v356
          %v671 = vpop.permute.xlu0 %670
          %v674 = vunpack.c.l.s4 839922192
          %v675 = vunpack.c.0.s8 %v674
          %v676 = vlaneseq
          %v677 = vshrl.u32 %v676, 7
          %v678 = vsub.s32 %v675, %v677
          %v679 = vrot.slane %v671, %v678
          %681 = vset.pattern.permute.xlu0 0
          %682 = vperm.xlu0 %681, %v357
          %v683 = vpop.permute.xlu0 %682
          %v686 = vunpack.c.l.s4 839922192
          %v687 = vunpack.c.0.s8 %v686
          %v688 = vlaneseq
          %v689 = vshrl.u32 %v688, 7
          %v690 = vsub.s32 %v687, %v689
          %v691 = vrot.slane %v683, %v690
          %v694 = vunpack.c.l.b16 %v506
          %v695 = vunpack.c.h.b16 %v506
          %v696 = vunpack.c.l.b16 %v507
          %v697 = vunpack.c.h.b16 %v507
          %v698 = vpack.c.b16 %v694, %v694
          %v699 = vpack.c.b16 %v695, %v695
          %v700 = vpack.c.b16 %v696, %v696
          %v701 = vpack.c.b16 %v697, %v697
          %v706 = vmul.bf16 %v655, %v698
          %v707 = vmul.bf16 %v667, %v699
          %v708 = vmul.bf16 %v679, %v700
          %v709 = vmul.bf16 %v691, %v701
          %v710 = vadd.bf16 %v640, %v706
          %v711 = vadd.bf16 %v641, %v707
          %v712 = vadd.bf16 %v642, %v708
          %v713 = vadd.bf16 %v643, %v709
          %715 = vset.pattern.permute.xlu0 0
          %716 = vperm.xlu0 %715, %v358
          %v717 = vpop.permute.xlu0 %716
          %v720 = vunpack.c.l.s4 839922192
          %v721 = vunpack.c.0.s8 %v720
          %v722 = vlaneseq
          %v723 = vshrl.u32 %v722, 7
          %v724 = vsub.s32 %v721, %v723
          %v725 = vrot.slane %v717, %v724
          %727 = vset.pattern.permute.xlu0 0
          %728 = vperm.xlu0 %727, %v359
          %v729 = vpop.permute.xlu0 %728
          %v732 = vunpack.c.l.s4 839922192
          %v733 = vunpack.c.0.s8 %v732
          %v734 = vlaneseq
          %v735 = vshrl.u32 %v734, 7
          %v736 = vsub.s32 %v733, %v735
          %v737 = vrot.slane %v729, %v736
          %739 = vset.pattern.permute.xlu0 0
          %740 = vperm.xlu0 %739, %v360
          %v741 = vpop.permute.xlu0 %740
          %v744 = vunpack.c.l.s4 839922192
          %v745 = vunpack.c.0.s8 %v744
          %v746 = vlaneseq
          %v747 = vshrl.u32 %v746, 7
          %v748 = vsub.s32 %v745, %v747
          %v749 = vrot.slane %v741, %v748
          %751 = vset.pattern.permute.xlu0 0
          %752 = vperm.xlu0 %751, %v361
          %v753 = vpop.permute.xlu0 %752
          %v756 = vunpack.c.l.s4 839922192
          %v757 = vunpack.c.0.s8 %v756
          %v758 = vlaneseq
          %v759 = vshrl.u32 %v758, 7
          %v760 = vsub.s32 %v757, %v759
          %v761 = vrot.slane %v753, %v760
          %v762 = vadd.bf16 %v710, %v725
          %v763 = vadd.bf16 %v711, %v737
          %v764 = vadd.bf16 %v712, %v749
          %v765 = vadd.bf16 %v713, %v761
          %v766 = vmax.bf16 %v762, 0
          %v767 = vmax.bf16 %v763, 0
          %v768 = vmax.bf16 %v764, 0
          %v769 = vmax.bf16 %v765, 0
          %v770 = vmin.bf16 %v766, 1086341312
          %v771 = vmin.bf16 %v767, 1086341312
          %v772 = vmin.bf16 %v768, 1086341312
          %v773 = vmin.bf16 %v769, 1086341312
          %775 = vset.pattern.permute.xlu0 0
          %776 = vperm.xlu0 %775, %v345
          %v777 = vpop.permute.xlu0 %776
          %v783 = vunpack.c.l.b16 %v770
          %v784 = vunpack.c.l.b16 %v771
          %v785 = vunpack.c.l.b16 %v772
          %v786 = vunpack.c.l.b16 %v773
          %v787 = vpack.c.b16 %v784, %v783
          %v788 = vpack.c.b16 %v786, %v785
          %vm791 = vcmask 261120
          %v793 = vsel %vm791, %v340, 0
          %795 = vmatprep.subr.bf16.mxu0 0
          %796 = vmatpush1.bf16.msra.mxu0 0
          %797 = vmatprep.subr.bf16.mxu0 0
          %798 = vmatpush1.bf16.msra.mxu0 0
          %799 = vmatprep.subr.bf16.mxu0 0
          %800 = vmatpush1.bf16.msra.mxu0 0
          %801 = vmatprep.subr.bf16.mxu0 0
          %802 = vmatpush1.bf16.msra.mxu0 0
          %803 = vmatprep.subr.bf16.mxu0 0
          %804 = vmatpush1.bf16.msra.mxu0 0
          %805 = vmatprep.subr.bf16.mxu0 0
          %806 = vmatpush1.bf16.msra.mxu0 0
          %807 = vmatprep.subr.bf16.mxu0 0
          %808 = vmatpush1.bf16.msra.mxu0 %v788
          %809 = vmatprep.subr.bf16.mxu0 0
          %810 = vmatpush1.bf16.msra.mxu0 %v787
          %811 = vmatprep.subr.bf16.mxu0 0
          %812 = vmatpush2.bf16.msra.mxu0 0
          %813 = vmatprep.subr.bf16.mxu0 0
          %814 = vmatpush2.bf16.msra.mxu0 0
          %815 = vmatprep.subr.bf16.mxu0 0
          %816 = vmatpush2.bf16.msra.mxu0 0
          %817 = vmatprep.subr.bf16.mxu0 0
          %818 = vmatpush2.bf16.msra.mxu0 0
          %819 = vmatprep.subr.bf16.mxu0 0
          %820 = vmatpush2.bf16.msra.mxu0 0
          %821 = vmatprep.subr.bf16.mxu0 0
          %822 = vmatpush2.bf16.msra.mxu0 0
          %823 = vmatprep.subr.bf16.mxu0 0
          %824 = vmatpush2.bf16.msra.mxu0 0
          %825 = vmatprep.subr.bf16.mxu0 0
          %826 = vmatpush2.bf16.msra.mxu0 0
          %827 = vmatprep.mubr.bf16.mxu0 0
          %828 = vmatmul.mubr.bf16.gmra.mxu0 %v793
          %v829 = vpop.f32.mrf.mxu0
          %v830 = vadd.f32 %v777, %v829
          %v831 = vpop.f32.mrf.mxu0
          %v832 = vpop.f32.mrf.mxu0
          %v833 = vpop.f32.mrf.mxu0
          %834 = vdwg.mxu0
          %v835 = vadd.f32 %v830, %v374
          %s836 = scalar_lea.vmem %s326, %s372 [#allocation2]
          %837 = vst [vmem:[%s836] sm:$0xff] %v835
        $region61: #{tpu_custom_call.1} parent=55 // loop_footer
          %s371 = sadd.s32 1, %s367
        $region62: #{tpu_custom_call.1} parent=55 // loop_footer_branch
          %366 = sbr.rel target = $region58
        $region63: #{tpu_custom_call.1} parent=55 // loop_exit
          _
        %s838 = sand.u32 %s225, 1
        %s839 = scalar_lea.sflag [#allocation3], %s838
        %s840 = sand.u32 %s225, 1
        %s841 = smul.addr %s840, 16
        %s842 = scalar_lea.vmem [#allocation2], %s841
        // Predicated region
        $region64: #{tpu_custom_call.1} parent=55 // pred_check
          %p843 = pneg %p235
        $region65: #{tpu_custom_call.1} parent=55 // pred_check_branch
          %845 = sbr.rel (%p843) target = $region67
        $region66: #{tpu_custom_call.1} parent=55 // pred_region
          %s846 = smul.u32 2, %s23
          %s848 = ssub.s32 256, 256
          %849 = vsyncadd %s839, %s848
          %s850 = smul.addr %s846, 128
          %s851 = scalar_lea.hbm %s9, %s850
          %s852 = sshll.u32 %s842, 4
          %s853 = int_to_ptr.vmem [resolvable:$true] %s852
          %858 = dma.vmem_to_hbm [thread:$0]  %s853, 256, %s851, %s839, 128, 128, 8
        $region67: #{tpu_custom_call.1} parent=55 // pred_fallthru
          _
      $region56: #{tpu_custom_call.1} parent=5 // pred_fallthru
        _
      %p859 = scmp.le.s32.totalorder 2, %s18
      // Predicated region
      $region68: #{tpu_custom_call.1} parent=5 // pred_check
        %p860 = pneg %p859
      $region69: #{tpu_custom_call.1} parent=5 // pred_check_branch
        %862 = sbr.rel (%p860) target = $region71
      $region70: #{tpu_custom_call.1} parent=5 // pred_region
        %s863 = ssub.s32 %s18, 2
        // Predicated region
        $region72: #{tpu_custom_call.1} parent=70 // pred_check
          %p864 = pneg %p241
        $region73: #{tpu_custom_call.1} parent=70 // pred_check_branch
          %866 = sbr.rel (%p864) target = $region75
        $region74: #{tpu_custom_call.1} parent=70 // pred_region
          %s867 = sand.u32 %s226, 1
          %s868 = scalar_lea.sflag [#allocation3], %s867
          %s869 = sand.u32 %s226, 1
          %s870 = smul.addr %s869, 16
          %s871 = scalar_lea.vmem [#allocation2], %s870
          %872 = dma.done %s868, 256
        $region75: #{tpu_custom_call.1} parent=70 // pred_fallthru
          _
      $region71: #{tpu_custom_call.1} parent=5 // pred_fallthru
        _
    $region6: #{tpu_custom_call.1} parent=1 // loop_footer
      %s22 = sadd.s32 1, %s18
    $region7: #{tpu_custom_call.1} parent=1 // loop_footer_branch
      %17 = sbr.rel target = $region3
    $region8: #{tpu_custom_call.1} parent=1 // loop_exit
      _
    %873 = vsyncpa [#allocation3], 1
    %s874 = scalar_lea.sflag [#allocation3], 1
    %875 = vsyncpa %s874, 1

</llo_original>
